<compile_context>
chip_gen: v6e
topology: v6e:2x2x1
jax: 0.10.0
libtpu: 0.0.40
codegen_flags: <defaults>
</compile_context>

<pallas_src>
import functools

import jax
import jax.numpy as jnp
from jax import lax
from jax.experimental import pallas as pl
from jax.experimental.pallas import tpu as pltpu


def _similarity_kernel(img_ref, txt_ref, out_ref, *, n_text, seg_len, out_w):
    """Single-invocation kernel.

    img_ref : (B, D)      image features (un-normalized)
    txt_ref : (R, D)      flattened prompt+text embeddings, R = n_text*seg_len
                          (rows padded only to a multiple of 8 sublanes; here
                          R = 48 needs no padding at all)
    out_ref : (B, out_w)  out_w = R rounded up to a multiple of 128 lanes;
                          lanes [t*seg_len, (t+1)*seg_len) hold the softmax of
                          prompt t's scaled similarities, pad lanes are 0.
    """
    img = img_ref[...]                                       # (B, D) f32
    # L2-normalize once (single grid step => never recomputed); rsqrt+multiply
    # with the 100.0 logit scale folded into the same multiply (EUP, no divide).
    img_n = img * (100.0 * lax.rsqrt(jnp.sum(img * img, axis=-1, keepdims=True)))

    txt = txt_ref[...]                                       # (R, D) f32

    # Raw logits: contract on D for BOTH operands (== img_n @ txt.T without
    # materializing a transpose).
    # TODO(synk): on v5e, confirm via pl.lower_as_mlir that this lowers to a
    # transposed-RHS vmatmul with no XLU vxpose; if one appears, pre-lay text
    # out as (D, R) in the wrapper instead.
    raw = lax.dot_general(
        img_n, txt,
        dimension_numbers=(((1,), (1,)), ((), ())),
        preferred_element_type=jnp.float32)                  # (B, R)

    # Text normalization applied AFTER the dot as a per-column scale (B*R
    # multiplies) instead of materializing a normalized (R, D) text block.
    # The row sum-of-squares is reduced on the otherwise-idle MXU against a
    # ones row so it lands lane-oriented (1, R) directly — no XLU transpose of
    # an (R, 1) column is needed.  No clamp: any all-zero pad row would only
    # produce inf/NaN in lanes excluded from every softmax segment below (and
    # with R = 48 there are no pad rows at all).
    txt_sq = txt * txt
    ss = lax.dot_general(
        jnp.ones((1, txt.shape[1]), jnp.float32), txt_sq,
        dimension_numbers=(((1,), (1,)), ((), ())),
        preferred_element_type=jnp.float32)                  # (1, R)
    logits = raw * lax.rsqrt(ss)                             # (B, R)

    # Segmented softmax (one segment of seg_len lanes per prompt), computed
    # full-width with lane masks — no per-prompt lane slicing or concatenation.
    lane = lax.broadcasted_iota(jnp.int32, logits.shape, 1)  # (B, R)
    sm = jnp.zeros_like(logits)
    for t in range(n_text):                                  # static unroll; T is tiny
        in_seg = (lane >= t * seg_len) & (lane < (t + 1) * seg_len)
        seg = jnp.where(in_seg, logits, jnp.float32(-1e30))
        m = jnp.max(seg, axis=-1, keepdims=True)             # per-segment max
        e = jnp.exp(seg - m)                                 # exactly 0 outside segment
        # Exact reciprocal: one divide per row (approx=True would exceed the
        # 1e-4 correctness tolerance of this test).
        sm = sm + e * pl.reciprocal(jnp.sum(e, axis=-1, keepdims=True))

    # Lane-dense output slab (last dim a multiple of 128).  When R itself is a
    # multiple of 128 this is one unmasked full-width store; otherwise one
    # full-width zero fill plus one masked store of the valid lanes — either
    # way the store count is independent of n_text (no per-prompt stores).
    r = sm.shape[1]
    if r == out_w:
        out_ref[...] = sm
    else:
        out_ref[...] = jnp.zeros_like(out_ref)
        out_ref[:, :r] = sm


def prompt_tuning_similarity(image_features, text_cat):
    """image_features: (B, D) f32; text_cat: (T, L, D) f32 -> (T, B, L) f32."""
    B, D = image_features.shape
    T, L, _ = text_cat.shape
    rows = T * L
    # Text rows only need 8-sublane alignment for compute (rows = 48 already
    # is), so no padded HBM copy of the largest tensor is created and the
    # MXU / normalization path never sees per-prompt 128-row padding.  The
    # 128-lane padding exists only on the output/store side.
    rows_pad = ((rows + 7) // 8) * 8
    text_flat = text_cat.reshape(rows, D)                    # free layout change
    if rows_pad != rows:
        text_flat = jnp.pad(text_flat, ((0, rows_pad - rows), (0, 0)))
    out_w = max(128, ((rows + 127) // 128) * 128)

    kernel = functools.partial(
        _similarity_kernel, n_text=T, seg_len=L, out_w=out_w)

    # Whole problem fits trivially in VMEM (text: rows*D*4 = 96 KiB), so run a
    # single un-gridded invocation.
    # TODO(synk): for production T/L/B, grid over T (and B) with
    # dimension_semantics=("parallel", ...) to shard across v7x's 2 TensorCores,
    # keep the image BlockSpec index_map constant so img stays resident, and
    # size text tiles generation-aware (v7x: keep inputs x double-buffers under
    # ~16-24 MiB of its 64 MiB VMEM; v6e/v5e: multi-MiB tiles, raising
    # vmem_limit_bytes as needed).  Tolerance permitting, cast both dot
    # operands to bf16 (keeping preferred_element_type=f32).  If B stays tiny,
    # batch more images per call rather than tiling finer — the dot's M dim
    # uses only B of the MXU's rows.
    out = pl.pallas_call(
        kernel,
        out_shape=jax.ShapeDtypeStruct((B, out_w), jnp.float32),
        in_specs=[
            pl.BlockSpec(memory_space=pltpu.MemorySpace.VMEM),
            pl.BlockSpec(memory_space=pltpu.MemorySpace.VMEM),
        ],
        out_specs=pl.BlockSpec(memory_space=pltpu.MemorySpace.VMEM),
    )(image_features, text_flat)

    # Wrapper-side layout plumbing: drop lane padding, (B, T*L) -> (T, B, L).
    return out[:, :rows].reshape(B, T, L).transpose(1, 0, 2)


def reference_similarity(image_features, text_cat):
    img_n = image_features / jnp.linalg.norm(image_features, axis=-1, keepdims=True)
    txt_n = text_cat / jnp.linalg.norm(text_cat, axis=-1, keepdims=True)
    logits = 100.0 * jnp.einsum("bd,tld->tbl", img_n, txt_n)
    return jax.nn.softmax(logits, axis=-1)


if __name__ == "__main__":
    # Small, deterministic shapes consistent with the module.
    B, C, H, W = 2, 3, 16, 16        # images (NCHW, as in PyTorch)
    T, S = 2, 8                      # number of text prompts, text sequence length
    P, D = 16, 512                   # num_prompt_tokens, prompt_dim (module defaults)
    VOCAB = 64

    key = jax.random.PRNGKey(0)
    k_img, k_wimg, k_emb, k_prompt, k_ids = jax.random.split(key, 5)

    images = jax.random.normal(k_img, (B, C, H, W), dtype=jnp.float32)

    # --- synthetic frozen "CLIP" encoders (glue; stand-ins for pretrained nets) ---
    # TODO(synk): real CLIP ViT image encoder / text transformer / tokenizer are
    # pretrained modules and are not translated; replaced with deterministic
    # linear projection and embedding lookup.
    w_image = jax.random.normal(k_wimg, (C * H * W, D), dtype=jnp.float32) * 0.02
    image_features = images.reshape(B, -1) @ w_image                  # (B, D)

    token_ids = jax.random.randint(k_ids, (T, S), 0, VOCAB)           # "processor" output
    token_emb_table = jax.random.normal(k_emb, (VOCAB, D), dtype=jnp.float32) * 0.02
    text_embeddings = token_emb_table[token_ids]                      # (T, S, D)

    # --- the module's own learnable parameter ---
    prompt_embeddings = jax.random.normal(k_prompt, (P, D), dtype=jnp.float32)

    # Concat prompt tokens in front of text tokens (glue, matches torch.cat dim=1)
    prompt_exp = jnp.broadcast_to(prompt_embeddings[None], (T, P, D))
    text_cat = jnp.concatenate([prompt_exp, text_embeddings], axis=1)  # (T, P+S, D)

    # --- Pallas kernel: normalize + scaled matmul + masked segmented softmax ---
    sim = prompt_tuning_similarity(image_features, text_cat)
    sim = jax.block_until_ready(sim)

    ref = reference_similarity(image_features, text_cat)
    assert sim.shape == (T, B, P + S)
    assert jnp.allclose(sim, ref, atol=1e-4, rtol=1e-4), "mismatch vs reference"
    assert jnp.allclose(jnp.sum(sim, axis=-1), 1.0, atol=1e-5), "softmax rows must sum to 1"

    print("KERNEL_OK")
</pallas_src>

<mosaic_0001>
module attributes {stable_mosaic.version = 11 : i64} {
  func.func @_similarity_kernel(%arg0: memref<2x512xf32, #tpu.memory_space<vmem>>, %arg1: memref<48x512xf32, #tpu.memory_space<vmem>>, %arg2: memref<2x128xf32, #tpu.memory_space<vmem>>) attributes {dimension_semantics = [], scalar_prefetch = 0 : i64, scratch_operands = 0 : i64, tpu.core_type = #tpu.core_type<tc>} {
    %c0 = arith.constant 0 : index
    %c0_0 = arith.constant 0 : index
    %0 = vector.load %arg0[%c0, %c0_0] : memref<2x512xf32, #tpu.memory_space<vmem>>, vector<2x512xf32>
    %1 = arith.mulf %0, %0 : vector<2x512xf32>
    %cst = arith.constant dense<0.000000e+00> : vector<2xf32>
    %2 = vector.multi_reduction <add>, %1, %cst [1] : vector<2x512xf32> to vector<2xf32>
    %3 = vector.shape_cast %2 : vector<2xf32> to vector<2x1xf32>
    %4 = math.rsqrt %3 : vector<2x1xf32>
    %cst_1 = arith.constant 1.000000e+02 : f32
    %5 = vector.broadcast %cst_1 : f32 to vector<2x1xf32>
    %6 = arith.mulf %5, %4 : vector<2x1xf32>
    %7 = vector.broadcast %6 : vector<2x1xf32> to vector<2x512xf32>
    %8 = arith.mulf %0, %7 : vector<2x512xf32>
    %c0_2 = arith.constant 0 : index
    %c0_3 = arith.constant 0 : index
    %9 = vector.load %arg1[%c0_2, %c0_3] : memref<48x512xf32, #tpu.memory_space<vmem>>, vector<48x512xf32>
    %cst_4 = arith.constant dense<0.000000e+00> : vector<2x48xf32>
    %10 = tpu.matmul %8, %9, %cst_4 {dimension_numbers = #tpu.dot_dimension_numbers<[1], [1], [0], [0], [0, 0, 1, 0], [], []>} : vector<2x512xf32>, vector<48x512xf32>, vector<2x48xf32> -> vector<2x48xf32>
    %11 = arith.mulf %9, %9 : vector<48x512xf32>
    %cst_5 = arith.constant 1.000000e+00 : f32
    %12 = vector.broadcast %cst_5 : f32 to vector<1x512xf32>
    %cst_6 = arith.constant dense<0.000000e+00> : vector<1x48xf32>
    %13 = tpu.matmul %12, %11, %cst_6 {dimension_numbers = #tpu.dot_dimension_numbers<[1], [1], [0], [0], [0, 0, 1, 0], [], []>} : vector<1x512xf32>, vector<48x512xf32>, vector<1x48xf32> -> vector<1x48xf32>
    %14 = math.rsqrt %13 : vector<1x48xf32>
    %15 = vector.broadcast %14 : vector<1x48xf32> to vector<2x48xf32>
    %16 = arith.mulf %10, %15 : vector<2x48xf32>
    %17 = tpu.iota {dimensions = array<i32: 1>} : vector<2x48xi32>
    %cst_7 = arith.constant 0.000000e+00 : f32
    %18 = vector.broadcast %cst_7 : f32 to vector<2x48xf32>
    %c0_i32 = arith.constant 0 : i32
    %19 = vector.broadcast %c0_i32 : i32 to vector<2x48xi32>
    %20 = arith.cmpi sge, %17, %19 : vector<2x48xi32>
    %c24_i32 = arith.constant 24 : i32
    %21 = vector.broadcast %c24_i32 : i32 to vector<2x48xi32>
    %22 = arith.cmpi slt, %17, %21 : vector<2x48xi32>
    %23 = arith.andi %20, %22 : vector<2x48xi1>
    %cst_8 = arith.constant -1.000000e+30 : f32
    %24 = vector.broadcast %cst_8 : f32 to vector<2x48xf32>
    %25 = arith.select %23, %16, %24 : vector<2x48xi1>, vector<2x48xf32>
    %cst_9 = arith.constant dense<0xFF800000> : vector<2xf32>
    %26 = vector.multi_reduction <maximumf>, %25, %cst_9 [1] : vector<2x48xf32> to vector<2xf32>
    %27 = vector.shape_cast %26 : vector<2xf32> to vector<2x1xf32>
    %28 = vector.broadcast %27 : vector<2x1xf32> to vector<2x48xf32>
    %29 = arith.subf %25, %28 : vector<2x48xf32>
    %30 = math.exp %29 : vector<2x48xf32>
    %cst_10 = arith.constant dense<0.000000e+00> : vector<2xf32>
    %31 = vector.multi_reduction <add>, %30, %cst_10 [1] : vector<2x48xf32> to vector<2xf32>
    %32 = vector.shape_cast %31 : vector<2xf32> to vector<2x1xf32>
    %33 = tpu.reciprocal %32 : vector<2x1xf32> -> vector<2x1xf32>
    %34 = vector.broadcast %33 : vector<2x1xf32> to vector<2x48xf32>
    %35 = arith.mulf %30, %34 : vector<2x48xf32>
    %36 = arith.addf %18, %35 : vector<2x48xf32>
    %c24_i32_11 = arith.constant 24 : i32
    %37 = vector.broadcast %c24_i32_11 : i32 to vector<2x48xi32>
    %38 = arith.cmpi sge, %17, %37 : vector<2x48xi32>
    %c48_i32 = arith.constant 48 : i32
    %39 = vector.broadcast %c48_i32 : i32 to vector<2x48xi32>
    %40 = arith.cmpi slt, %17, %39 : vector<2x48xi32>
    %41 = arith.andi %38, %40 : vector<2x48xi1>
    %cst_12 = arith.constant -1.000000e+30 : f32
    %42 = vector.broadcast %cst_12 : f32 to vector<2x48xf32>
    %43 = arith.select %41, %16, %42 : vector<2x48xi1>, vector<2x48xf32>
    %cst_13 = arith.constant dense<0xFF800000> : vector<2xf32>
    %44 = vector.multi_reduction <maximumf>, %43, %cst_13 [1] : vector<2x48xf32> to vector<2xf32>
    %45 = vector.shape_cast %44 : vector<2xf32> to vector<2x1xf32>
    %46 = vector.broadcast %45 : vector<2x1xf32> to vector<2x48xf32>
    %47 = arith.subf %43, %46 : vector<2x48xf32>
    %48 = math.exp %47 : vector<2x48xf32>
    %cst_14 = arith.constant dense<0.000000e+00> : vector<2xf32>
    %49 = vector.multi_reduction <add>, %48, %cst_14 [1] : vector<2x48xf32> to vector<2xf32>
    %50 = vector.shape_cast %49 : vector<2xf32> to vector<2x1xf32>
    %51 = tpu.reciprocal %50 : vector<2x1xf32> -> vector<2x1xf32>
    %52 = vector.broadcast %51 : vector<2x1xf32> to vector<2x48xf32>
    %53 = arith.mulf %48, %52 : vector<2x48xf32>
    %54 = arith.addf %36, %53 : vector<2x48xf32>
    %cst_15 = arith.constant 0.000000e+00 : f32
    %55 = vector.broadcast %cst_15 : f32 to vector<2x128xf32>
    %c0_16 = arith.constant 0 : index
    %c0_17 = arith.constant 0 : index
    %56 = vector.load %arg2[%c0_16, %c0_17] : memref<2x128xf32, #tpu.memory_space<vmem>>, vector<2x128xf32>
    tpu.vector_store %arg2[%c0_16, %c0_17], %55 {strides = array<i32>} : memref<2x128xf32, #tpu.memory_space<vmem>>, vector<2x128xf32>,
    %c0_18 = arith.constant 0 : index
    %c0_19 = arith.constant 0 : index
    %57 = vector.load %arg2[%c0_18, %c0_19] : memref<2x128xf32, #tpu.memory_space<vmem>>, vector<2x48xf32>
    tpu.vector_store %arg2[%c0_18, %c0_19], %54 {strides = array<i32>} : memref<2x128xf32, #tpu.memory_space<vmem>>, vector<2x48xf32>,
    return
  }
}

</mosaic_0001>

<llo_original>
// kernel: tpu_custom_call.1
$region0: #{tpu_custom_call.1}
  #allocation0 [shape = 'u32[]', space=smem, size = 0x4, offset = 0x4, fixed_abs, tag = 'smem constant byte address 0x4 - core index']
  #allocation1 [shape = 'u32[144,128]{1,0:T(1,128)}', space=vmem, size = 0x12000, scoped, tag = 'internal scratch']
  %s0 = inlined_call_operand.hbm [shape: f32[2,512], index: 0, kind: input, shape index: {}]
  %s1 = inlined_call_operand.hbm [shape: f32[48,512], index: 1, kind: input, shape index: {}]
  %s2 = inlined_call_operand.hbm [shape: f32[2,128], index: 2, kind: output, shape index: {}]
  %s3 = sld [smem:[#allocation0]]
  $region26: #{tpu_custom_call.1} parent=0
    _
  %s5 = ssub.s32 1, %s3
  %s6 = scalar_select 0, %s5, %s3
  $region1: #{tpu_custom_call.1} parent=0
    #allocation2 [shape = 'u8[4096]{0}', space=vmem, size = 0x1000, scoped, tag = 'input window, operand 0, single buffered']
    #allocation3 [shape = 's32[1]{0}', space=sflag, size = 0x4, scoped, tag = 'scoped memory for tpu_custom_call.1']
    #allocation4 [shape = 's32[1]{0}', space=sflag, size = 0x4, scoped, tag = 'scoped memory for tpu_custom_call.1']
    #allocation5 [shape = 'u8[98304]{0}', space=vmem, size = 0x18000, scoped, tag = 'input window, operand 1, single buffered']
    #allocation6 [shape = 's32[1]{0}', space=sflag, size = 0x4, scoped, tag = 'scoped memory for tpu_custom_call.1']
    #allocation7 [shape = 'u8[1024]{0}', space=vmem, size = 0x400, scoped, tag = 'output window, operand 0, single buffered']
    %7 = vsyncpa [#allocation3], 0
    %8 = vsyncpa [#allocation6], 0
    %9 = vsyncpa [#allocation4], 0
    // Predicated region
    $region2: #{tpu_custom_call.1} parent=1 // pred_check
      _
    $region3: #{tpu_custom_call.1} parent=1 // pred_check_branch
      %11 = sbr.rel (0) target = $region5
    $region4: #{tpu_custom_call.1} parent=1 // pred_region
      %s13 = ssub.s32 128, 128
      %14 = vsyncadd [#allocation3], %s13
      %s16 = sshll.u32 [#allocation2], 4
      %s17 = int_to_ptr.vmem [resolvable:$true] %s16
      %19 = dma.hbm_to_vmem [thread:$0]  %s0, 128, %s17, [#allocation3]
    $region5: #{tpu_custom_call.1} parent=1 // pred_fallthru
      _
    // Predicated region
    $region6: #{tpu_custom_call.1} parent=1 // pred_check
      _
    $region7: #{tpu_custom_call.1} parent=1 // pred_check_branch
      %21 = sbr.rel (0) target = $region9
    $region8: #{tpu_custom_call.1} parent=1 // pred_region
      %s23 = ssub.s32 3072, 3072
      %24 = vsyncadd [#allocation6], %s23
      %s25 = sshll.u32 [#allocation5], 4
      %s26 = int_to_ptr.vmem [resolvable:$true] %s25
      %31 = dma.hbm_to_vmem [thread:$0]  %s1, 3072, %s26, [#allocation6], 512, 512, 32
    $region9: #{tpu_custom_call.1} parent=1 // pred_fallthru
      _
    // Predicated region
    $region10: #{tpu_custom_call.1} parent=1 // pred_check
      _
    $region11: #{tpu_custom_call.1} parent=1 // pred_check_branch
      %33 = sbr.rel (0) target = $region13
    $region12: #{tpu_custom_call.1} parent=1 // pred_region
      %34 = dma.done [#allocation3], 128
    $region13: #{tpu_custom_call.1} parent=1 // pred_fallthru
      _
    // Predicated region
    $region14: #{tpu_custom_call.1} parent=1 // pred_check
      _
    $region15: #{tpu_custom_call.1} parent=1 // pred_check_branch
      %36 = sbr.rel (0) target = $region17
    $region16: #{tpu_custom_call.1} parent=1 // pred_region
      %37 = dma.done [#allocation6], 3072
    $region17: #{tpu_custom_call.1} parent=1 // pred_fallthru
      _
    %v38 = vld [vmem:[#allocation2] sm:$0xff]
    %v39 = vmul.f32 %v38, %v38
    %v41 = vcombine.high %v39, %v39
    %v43 = vunpack.c.l.s4 1983009808
    %v44 = vunpack.c.0.s8 %v43
    %v45 = vlaneseq
    %v46 = vshrl.u32 %v45, 7
    %v47 = vsub.s32 %v44, %v46
    %v48 = vrot.slane %v39, %v47
    %v50 = vunpack.c.l.s4 1983009808
    %v51 = vunpack.c.0.s8 %v50
    %v52 = vlaneseq
    %v53 = vshrl.u32 %v52, 7
    %v54 = vsub.s32 %v51, %v53
    %v55 = vrot.slane %v41, %v54
    %v56 = vcombine.high %v48, %v48
    %v57 = vcombine.high %v55, %v55
    %vm62 = vcmask 1041408
    %v63 = vsel %vm62, %v48, 0.0
    %v64 = vsel %vm62, %v56, 0.0
    %v65 = vadd.f32 %v63, %v64
    %v66 = vsel %vm62, %v55, 0.0
    %v67 = vadd.f32 %v65, %v66
    %v68 = vsel %vm62, %v57, 0.0
    %v69 = vadd.f32 %v67, %v68
    %70 = vadd.xlane.f32.xlu0 %v69
    %v71 = vpop.xlane.xlu0 %70
    %v72 = vrsqrt.pop %v71
    %v73 = vmul.f32 %v72, 100.0
    %v76 = vunpack.c.l.s4 269488144
    %v77 = vunpack.c.0.s8 %v76
    %v78 = vlaneseq
    %v79 = vshrl.u32 %v78, 7
    %v80 = vsub.s32 %v77, %v79
    %v81 = vrot.slane %v73, %v80
    %v83 = vmul.f32 %v38, %v81
    %v84 = vld [vmem:[#allocation5] sm:$0xff]
    %v85 = vld [vmem:[#allocation5 + $0x8] sm:$0xff]
    %v86 = vld [vmem:[#allocation5 + $0x10] sm:$0xff]
    %v87 = vld [vmem:[#allocation5 + $0x18] sm:$0xff]
    %v88 = vld [vmem:[#allocation5 + $0x20] sm:$0xff]
    %v89 = vld [vmem:[#allocation5 + $0x28] sm:$0xff]
    %v90 = vld [vmem:[#allocation5 + $0x30] sm:$0xff]
    %v91 = vld [vmem:[#allocation5 + $0x38] sm:$0xff]
    %v92 = vld [vmem:[#allocation5 + $0x40] sm:$0xff]
    %v93 = vld [vmem:[#allocation5 + $0x48] sm:$0xff]
    %v94 = vld [vmem:[#allocation5 + $0x50] sm:$0xff]
    %v95 = vld [vmem:[#allocation5 + $0x58] sm:$0xff]
    %v96 = vld [vmem:[#allocation5 + $0x60] sm:$0xff]
    %v97 = vld [vmem:[#allocation5 + $0x68] sm:$0xff]
    %v98 = vld [vmem:[#allocation5 + $0x70] sm:$0xff]
    %v99 = vld [vmem:[#allocation5 + $0x78] sm:$0xff]
    %v100 = vld [vmem:[#allocation5 + $0x80] sm:$0xff]
    %v101 = vld [vmem:[#allocation5 + $0x88] sm:$0xff]
    %v102 = vld [vmem:[#allocation5 + $0x90] sm:$0xff]
    %v103 = vld [vmem:[#allocation5 + $0x98] sm:$0xff]
    %v104 = vld [vmem:[#allocation5 + $0xa0] sm:$0xff]
    %v105 = vld [vmem:[#allocation5 + $0xa8] sm:$0xff]
    %v106 = vld [vmem:[#allocation5 + $0xb0] sm:$0xff]
    %v107 = vld [vmem:[#allocation5 + $0xb8] sm:$0xff]
    %v109 = vcombine.high %v83, %v83
    %v111 = vunpack.c.l.s4 1983009808
    %v112 = vunpack.c.0.s8 %v111
    %v113 = vlaneseq
    %v114 = vshrl.u32 %v113, 7
    %v115 = vsub.s32 %v112, %v114
    %v116 = vrot.slane %v83, %v115
    %v118 = vunpack.c.l.s4 1983009808
    %v119 = vunpack.c.0.s8 %v118
    %v120 = vlaneseq
    %v121 = vshrl.u32 %v120, 7
    %v122 = vsub.s32 %v119, %v121
    %v123 = vrot.slane %v109, %v122
    %v124 = vcombine.high %v116, %v116
    %v125 = vcombine.high %v123, %v123
    %130 = vmatprep.subr.mxu0 0.0
    %131 = vmatpush1.xpose.msra.mxu0 0.0
    %132 = vmatprep.subr.mxu0 0.0
    %133 = vmatpush1.xpose.msra.mxu0 0.0
    %134 = vmatprep.subr.mxu0 0.0
    %135 = vmatpush1.xpose.msra.mxu0 0.0
    %136 = vmatprep.subr.mxu0 0.0
    %137 = vmatpush1.xpose.msra.mxu0 0.0
    %138 = vmatprep.subr.mxu0 0.0
    %139 = vmatpush1.xpose.msra.mxu0 0.0
    %140 = vmatprep.subr.mxu0 0.0
    %141 = vmatpush1.xpose.msra.mxu0 0.0
    %142 = vmatprep.subr.mxu0 0.0
    %143 = vmatpush1.xpose.msra.mxu0 0.0
    %144 = vmatprep.subr.mxu0 0.0
    %145 = vmatpush1.xpose.msra.mxu0 0.0
    %146 = vmatprep.subr.mxu0 0.0
    %147 = vmatpush1.xpose.msra.mxu0 0.0
    %148 = vmatprep.subr.mxu0 0.0
    %149 = vmatpush1.xpose.msra.mxu0 0.0
    %150 = vmatprep.subr.mxu0 %v105
    %151 = vmatpush1.xpose.msra.mxu0 %v104
    %152 = vmatprep.subr.mxu0 %v101
    %153 = vmatpush1.xpose.msra.mxu0 %v100
    %154 = vmatprep.subr.mxu0 %v97
    %155 = vmatpush1.xpose.msra.mxu0 %v96
    %156 = vmatprep.subr.mxu0 %v93
    %157 = vmatpush1.xpose.msra.mxu0 %v92
    %158 = vmatprep.subr.mxu0 %v89
    %159 = vmatpush1.xpose.msra.mxu0 %v88
    %160 = vmatprep.subr.mxu0 %v85
    %161 = vmatpush1.xpose.msra.mxu0 %v84
    %162 = vmatprep.subr.mxu0 0.0
    %163 = vmatpush2.xpose.msra.mxu0 0.0
    %164 = vmatprep.subr.mxu0 0.0
    %165 = vmatpush2.xpose.msra.mxu0 0.0
    %166 = vmatprep.subr.mxu0 0.0
    %167 = vmatpush2.xpose.msra.mxu0 0.0
    %168 = vmatprep.subr.mxu0 0.0
    %169 = vmatpush2.xpose.msra.mxu0 0.0
    %170 = vmatprep.subr.mxu0 0.0
    %171 = vmatpush2.xpose.msra.mxu0 0.0
    %172 = vmatprep.subr.mxu0 0.0
    %173 = vmatpush2.xpose.msra.mxu0 0.0
    %174 = vmatprep.subr.mxu0 0.0
    %175 = vmatpush2.xpose.msra.mxu0 0.0
    %176 = vmatprep.subr.mxu0 0.0
    %177 = vmatpush2.xpose.msra.mxu0 0.0
    %178 = vmatprep.subr.mxu0 0.0
    %179 = vmatpush2.xpose.msra.mxu0 0.0
    %180 = vmatprep.subr.mxu0 0.0
    %181 = vmatpush2.xpose.msra.mxu0 0.0
    %182 = vmatprep.subr.mxu0 0.0
    %183 = vmatpush2.xpose.msra.mxu0 0.0
    %184 = vmatprep.subr.mxu0 0.0
    %185 = vmatpush2.xpose.msra.mxu0 0.0
    %186 = vmatprep.subr.mxu0 0.0
    %187 = vmatpush2.xpose.msra.mxu0 0.0
    %188 = vmatprep.subr.mxu0 0.0
    %189 = vmatpush2.xpose.msra.mxu0 0.0
    %190 = vmatprep.subr.mxu0 0.0
    %191 = vmatpush2.xpose.msra.mxu0 0.0
    %192 = vmatprep.subr.mxu0 0.0
    %193 = vmatpush2.xpose.msra.mxu0 0.0
    %194 = vmatprep.mubr.f32.mxu0 %v124
    %195 = vmatmul.mubr.f32.gmra.mxu0 %v116
    %v196 = vpop.f32.mrf.mxu0
    %v197 = vadd.f32 0.0, %v196
    %v198 = vpop.f32.mrf.mxu0
    %199 = vdwg.mxu0
    %200 = vmatprep.subr.mxu0 0.0
    %201 = vmatpush1.xpose.msra.mxu0 0.0
    %202 = vmatprep.subr.mxu0 0.0
    %203 = vmatpush1.xpose.msra.mxu0 0.0
    %204 = vmatprep.subr.mxu0 0.0
    %205 = vmatpush1.xpose.msra.mxu0 0.0
    %206 = vmatprep.subr.mxu0 0.0
    %207 = vmatpush1.xpose.msra.mxu0 0.0
    %208 = vmatprep.subr.mxu0 0.0
    %209 = vmatpush1.xpose.msra.mxu0 0.0
    %210 = vmatprep.subr.mxu0 0.0
    %211 = vmatpush1.xpose.msra.mxu0 0.0
    %212 = vmatprep.subr.mxu0 0.0
    %213 = vmatpush1.xpose.msra.mxu0 0.0
    %214 = vmatprep.subr.mxu0 0.0
    %215 = vmatpush1.xpose.msra.mxu0 0.0
    %216 = vmatprep.subr.mxu0 0.0
    %217 = vmatpush1.xpose.msra.mxu0 0.0
    %218 = vmatprep.subr.mxu0 0.0
    %219 = vmatpush1.xpose.msra.mxu0 0.0
    %220 = vmatprep.subr.mxu0 %v107
    %221 = vmatpush1.xpose.msra.mxu0 %v106
    %222 = vmatprep.subr.mxu0 %v103
    %223 = vmatpush1.xpose.msra.mxu0 %v102
    %224 = vmatprep.subr.mxu0 %v99
    %225 = vmatpush1.xpose.msra.mxu0 %v98
    %226 = vmatprep.subr.mxu0 %v95
    %227 = vmatpush1.xpose.msra.mxu0 %v94
    %228 = vmatprep.subr.mxu0 %v91
    %229 = vmatpush1.xpose.msra.mxu0 %v90
    %230 = vmatprep.subr.mxu0 %v87
    %231 = vmatpush1.xpose.msra.mxu0 %v86
    %232 = vmatprep.subr.mxu0 0.0
    %233 = vmatpush2.xpose.msra.mxu0 0.0
    %234 = vmatprep.subr.mxu0 0.0
    %235 = vmatpush2.xpose.msra.mxu0 0.0
    %236 = vmatprep.subr.mxu0 0.0
    %237 = vmatpush2.xpose.msra.mxu0 0.0
    %238 = vmatprep.subr.mxu0 0.0
    %239 = vmatpush2.xpose.msra.mxu0 0.0
    %240 = vmatprep.subr.mxu0 0.0
    %241 = vmatpush2.xpose.msra.mxu0 0.0
    %242 = vmatprep.subr.mxu0 0.0
    %243 = vmatpush2.xpose.msra.mxu0 0.0
    %244 = vmatprep.subr.mxu0 0.0
    %245 = vmatpush2.xpose.msra.mxu0 0.0
    %246 = vmatprep.subr.mxu0 0.0
    %247 = vmatpush2.xpose.msra.mxu0 0.0
    %248 = vmatprep.subr.mxu0 0.0
    %249 = vmatpush2.xpose.msra.mxu0 0.0
    %250 = vmatprep.subr.mxu0 0.0
    %251 = vmatpush2.xpose.msra.mxu0 0.0
    %252 = vmatprep.subr.mxu0 0.0
    %253 = vmatpush2.xpose.msra.mxu0 0.0
    %254 = vmatprep.subr.mxu0 0.0
    %255 = vmatpush2.xpose.msra.mxu0 0.0
    %256 = vmatprep.subr.mxu0 0.0
    %257 = vmatpush2.xpose.msra.mxu0 0.0
    %258 = vmatprep.subr.mxu0 0.0
    %259 = vmatpush2.xpose.msra.mxu0 0.0
    %260 = vmatprep.subr.mxu0 0.0
    %261 = vmatpush2.xpose.msra.mxu0 0.0
    %262 = vmatprep.subr.mxu0 0.0
    %263 = vmatpush2.xpose.msra.mxu0 0.0
    %264 = vmatprep.mubr.f32.mxu0 %v125
    %265 = vmatmul.mubr.f32.gmra.mxu0 %v123
    %v266 = vpop.f32.mrf.mxu0
    %v267 = vadd.f32 %v197, %v266
    %v268 = vpop.f32.mrf.mxu0
    %269 = vdwg.mxu0
    %v270 = vmul.f32 %v84, %v84
    %v271 = vmul.f32 %v85, %v85
    %v272 = vmul.f32 %v86, %v86
    %v273 = vmul.f32 %v87, %v87
    %v274 = vmul.f32 %v88, %v88
    %v275 = vmul.f32 %v89, %v89
    %v276 = vmul.f32 %v90, %v90
    %v277 = vmul.f32 %v91, %v91
    %v278 = vmul.f32 %v92, %v92
    %v279 = vmul.f32 %v93, %v93
    %v280 = vmul.f32 %v94, %v94
    %v281 = vmul.f32 %v95, %v95
    %v282 = vmul.f32 %v96, %v96
    %v283 = vmul.f32 %v97, %v97
    %v284 = vmul.f32 %v98, %v98
    %v285 = vmul.f32 %v99, %v99
    %v286 = vmul.f32 %v100, %v100
    %v287 = vmul.f32 %v101, %v101
    %v288 = vmul.f32 %v102, %v102
    %v289 = vmul.f32 %v103, %v103
    %v290 = vmul.f32 %v104, %v104
    %v291 = vmul.f32 %v105, %v105
    %v292 = vmul.f32 %v106, %v106
    %v293 = vmul.f32 %v107, %v107
    %294 = vmatprep.subr.mxu0 0.0
    %295 = vmatpush1.xpose.msra.mxu0 0.0
    %296 = vmatprep.subr.mxu0 0.0
    %297 = vmatpush1.xpose.msra.mxu0 0.0
    %298 = vmatprep.subr.mxu0 0.0
    %299 = vmatpush1.xpose.msra.mxu0 0.0
    %300 = vmatprep.subr.mxu0 0.0
    %301 = vmatpush1.xpose.msra.mxu0 0.0
    %302 = vmatprep.subr.mxu0 0.0
    %303 = vmatpush1.xpose.msra.mxu0 0.0
    %304 = vmatprep.subr.mxu0 0.0
    %305 = vmatpush1.xpose.msra.mxu0 0.0
    %306 = vmatprep.subr.mxu0 0.0
    %307 = vmatpush1.xpose.msra.mxu0 0.0
    %308 = vmatprep.subr.mxu0 0.0
    %309 = vmatpush1.xpose.msra.mxu0 0.0
    %310 = vmatprep.subr.mxu0 0.0
    %311 = vmatpush1.xpose.msra.mxu0 0.0
    %312 = vmatprep.subr.mxu0 0.0
    %313 = vmatpush1.xpose.msra.mxu0 0.0
    %314 = vmatprep.subr.mxu0 %v291
    %315 = vmatpush1.xpose.msra.mxu0 %v290
    %316 = vmatprep.subr.mxu0 %v287
    %317 = vmatpush1.xpose.msra.mxu0 %v286
    %318 = vmatprep.subr.mxu0 %v283
    %319 = vmatpush1.xpose.msra.mxu0 %v282
    %320 = vmatprep.subr.mxu0 %v279
    %321 = vmatpush1.xpose.msra.mxu0 %v278
    %322 = vmatprep.subr.mxu0 %v275
    %323 = vmatpush1.xpose.msra.mxu0 %v274
    %324 = vmatprep.subr.mxu0 %v271
    %325 = vmatpush1.xpose.msra.mxu0 %v270
    %326 = vmatprep.subr.mxu0 0.0
    %327 = vmatpush2.xpose.msra.mxu0 0.0
    %328 = vmatprep.subr.mxu0 0.0
    %329 = vmatpush2.xpose.msra.mxu0 0.0
    %330 = vmatprep.subr.mxu0 0.0
    %331 = vmatpush2.xpose.msra.mxu0 0.0
    %332 = vmatprep.subr.mxu0 0.0
    %333 = vmatpush2.xpose.msra.mxu0 0.0
    %334 = vmatprep.subr.mxu0 0.0
    %335 = vmatpush2.xpose.msra.mxu0 0.0
    %336 = vmatprep.subr.mxu0 0.0
    %337 = vmatpush2.xpose.msra.mxu0 0.0
    %338 = vmatprep.subr.mxu0 0.0
    %339 = vmatpush2.xpose.msra.mxu0 0.0
    %340 = vmatprep.subr.mxu0 0.0
    %341 = vmatpush2.xpose.msra.mxu0 0.0
    %342 = vmatprep.subr.mxu0 0.0
    %343 = vmatpush2.xpose.msra.mxu0 0.0
    %344 = vmatprep.subr.mxu0 0.0
    %345 = vmatpush2.xpose.msra.mxu0 0.0
    %346 = vmatprep.subr.mxu0 0.0
    %347 = vmatpush2.xpose.msra.mxu0 0.0
    %348 = vmatprep.subr.mxu0 0.0
    %349 = vmatpush2.xpose.msra.mxu0 0.0
    %350 = vmatprep.subr.mxu0 0.0
    %351 = vmatpush2.xpose.msra.mxu0 0.0
    %352 = vmatprep.subr.mxu0 0.0
    %353 = vmatpush2.xpose.msra.mxu0 0.0
    %354 = vmatprep.subr.mxu0 0.0
    %355 = vmatpush2.xpose.msra.mxu0 0.0
    %356 = vmatprep.subr.mxu0 0.0
    %357 = vmatpush2.xpose.msra.mxu0 0.0
    %358 = vmatprep.mubr.f32.mxu0 1.0
    %359 = vmatmul.mubr.f32.gmra.mxu0 1.0
    %v360 = vpop.f32.mrf.mxu0
    %v361 = vadd.f32 0.0, %v360
    %v362 = vpop.f32.mrf.mxu0
    %363 = vdwg.mxu0
    %364 = vmatprep.subr.mxu0 0.0
    %365 = vmatpush1.xpose.msra.mxu0 0.0
    %366 = vmatprep.subr.mxu0 0.0
    %367 = vmatpush1.xpose.msra.mxu0 0.0
    %368 = vmatprep.subr.mxu0 0.0
    %369 = vmatpush1.xpose.msra.mxu0 0.0
    %370 = vmatprep.subr.mxu0 0.0
    %371 = vmatpush1.xpose.msra.mxu0 0.0
    %372 = vmatprep.subr.mxu0 0.0
    %373 = vmatpush1.xpose.msra.mxu0 0.0
    %374 = vmatprep.subr.mxu0 0.0
    %375 = vmatpush1.xpose.msra.mxu0 0.0
    %376 = vmatprep.subr.mxu0 0.0
    %377 = vmatpush1.xpose.msra.mxu0 0.0
    %378 = vmatprep.subr.mxu0 0.0
    %379 = vmatpush1.xpose.msra.mxu0 0.0
    %380 = vmatprep.subr.mxu0 0.0
    %381 = vmatpush1.xpose.msra.mxu0 0.0
    %382 = vmatprep.subr.mxu0 0.0
    %383 = vmatpush1.xpose.msra.mxu0 0.0
    %384 = vmatprep.subr.mxu0 %v293
    %385 = vmatpush1.xpose.msra.mxu0 %v292
    %386 = vmatprep.subr.mxu0 %v289
    %387 = vmatpush1.xpose.msra.mxu0 %v288
    %388 = vmatprep.subr.mxu0 %v285
    %389 = vmatpush1.xpose.msra.mxu0 %v284
    %390 = vmatprep.subr.mxu0 %v281
    %391 = vmatpush1.xpose.msra.mxu0 %v280
    %392 = vmatprep.subr.mxu0 %v277
    %393 = vmatpush1.xpose.msra.mxu0 %v276
    %394 = vmatprep.subr.mxu0 %v273
    %395 = vmatpush1.xpose.msra.mxu0 %v272
    %396 = vmatprep.subr.mxu0 0.0
    %397 = vmatpush2.xpose.msra.mxu0 0.0
    %398 = vmatprep.subr.mxu0 0.0
    %399 = vmatpush2.xpose.msra.mxu0 0.0
    %400 = vmatprep.subr.mxu0 0.0
    %401 = vmatpush2.xpose.msra.mxu0 0.0
    %402 = vmatprep.subr.mxu0 0.0
    %403 = vmatpush2.xpose.msra.mxu0 0.0
    %404 = vmatprep.subr.mxu0 0.0
    %405 = vmatpush2.xpose.msra.mxu0 0.0
    %406 = vmatprep.subr.mxu0 0.0
    %407 = vmatpush2.xpose.msra.mxu0 0.0
    %408 = vmatprep.subr.mxu0 0.0
    %409 = vmatpush2.xpose.msra.mxu0 0.0
    %410 = vmatprep.subr.mxu0 0.0
    %411 = vmatpush2.xpose.msra.mxu0 0.0
    %412 = vmatprep.subr.mxu0 0.0
    %413 = vmatpush2.xpose.msra.mxu0 0.0
    %414 = vmatprep.subr.mxu0 0.0
    %415 = vmatpush2.xpose.msra.mxu0 0.0
    %416 = vmatprep.subr.mxu0 0.0
    %417 = vmatpush2.xpose.msra.mxu0 0.0
    %418 = vmatprep.subr.mxu0 0.0
    %419 = vmatpush2.xpose.msra.mxu0 0.0
    %420 = vmatprep.subr.mxu0 0.0
    %421 = vmatpush2.xpose.msra.mxu0 0.0
    %422 = vmatprep.subr.mxu0 0.0
    %423 = vmatpush2.xpose.msra.mxu0 0.0
    %424 = vmatprep.subr.mxu0 0.0
    %425 = vmatpush2.xpose.msra.mxu0 0.0
    %426 = vmatprep.subr.mxu0 0.0
    %427 = vmatpush2.xpose.msra.mxu0 0.0
    %428 = vmatprep.mubr.f32.mxu0 1.0
    %429 = vmatmul.mubr.f32.gmra.mxu0 1.0
    %v430 = vpop.f32.mrf.mxu0
    %v431 = vadd.f32 %v361, %v430
    %v432 = vpop.f32.mrf.mxu0
    %433 = vdwg.mxu0
    %v434 = vrsqrt.pop %v431
    %v435 = vlaneseq
    %v436 = vshrl.u32 %v435, 7
    %v437 = vsub.s32 0, %v436
    %v438 = vrot.slane %v434, %v437
    %v439 = vmul.f32 %v267, %v438
    %v440 = vlaneseq
    %v441 = vand.u32 %v440, 127
    %vm442 = vcmp.ge.s32.totalorder %v441, 0
    %vm443 = vcmp.lt.s32.totalorder %v441, 24
    %vm444 = vmand %vm442, %vm443
    %v445 = vsel %vm444, %v439, -1e+30
    %vm446 = vcmask 386048
    %v447 = vsel %vm446, %v445, -inf
    %448 = vmax.xlane.f32.xlu0 %v447
    %v449 = vpop.xlane.xlu0 %448
    %v450 = vsub.f32 %v445, %v449
    %v451 = vmul.f32 %v450, 1.442695
    %v452 = vpow.pop %v451
    %v453 = vsel %vm446, %v452, 0.0
    %454 = vadd.xlane.f32.xlu0 %v453
    %v455 = vpop.xlane.xlu0 %454
    %v456 = vrcp.pop %v455
    %v457 = vmul.f32 %v452, %v456
    %v458 = vadd.f32 %v457, 0.0
    %vm459 = vcmp.ge.s32.totalorder %v441, 24
    %vm460 = vcmp.lt.s32.totalorder %v441, 48
    %vm461 = vmand %vm459, %vm460
    %v462 = vsel %vm461, %v439, -1e+30
    %v463 = vsel %vm446, %v462, -inf
    %464 = vmax.xlane.f32.xlu0 %v463
    %v465 = vpop.xlane.xlu0 %464
    %v466 = vsub.f32 %v462, %v465
    %v467 = vmul.f32 %v466, 1.442695
    %v468 = vpow.pop %v467
    %v469 = vsel %vm446, %v468, 0.0
    %470 = vadd.xlane.f32.xlu0 %v469
    %v471 = vpop.xlane.xlu0 %470
    %v472 = vrcp.pop %v471
    %v473 = vmul.f32 %v468, %v472
    %v474 = vadd.f32 %v458, %v473
    %475 = vst [vmem:[#allocation7] sm:$0x3] 0.0
    %476 = vst.msk [vmem:[#allocation7] sm:$0x3] %vm446, %v474
    // Predicated region
    $region18: #{tpu_custom_call.1} parent=1 // pred_check
      _
    $region19: #{tpu_custom_call.1} parent=1 // pred_check_branch
      %478 = sbr.rel (0) target = $region21
    $region20: #{tpu_custom_call.1} parent=1 // pred_region
      %s480 = ssub.s32 32, 32
      %481 = vsyncadd [#allocation4], %s480
      %s483 = sshll.u32 [#allocation7], 4
      %s484 = int_to_ptr.vmem [resolvable:$true] %s483
      %486 = dma.vmem_to_hbm [thread:$0]  %s484, 32, %s2, [#allocation4]
    $region21: #{tpu_custom_call.1} parent=1 // pred_fallthru
      _
    // Predicated region
    $region22: #{tpu_custom_call.1} parent=1 // pred_check
      _
    $region23: #{tpu_custom_call.1} parent=1 // pred_check_branch
      %488 = sbr.rel (0) target = $region25
    $region24: #{tpu_custom_call.1} parent=1 // pred_region
      %489 = dma.done [#allocation4], 32
    $region25: #{tpu_custom_call.1} parent=1 // pred_fallthru
      _
    %490 = vsyncpa [#allocation3], 1
    %491 = vsyncpa [#allocation6], 1
    %492 = vsyncpa [#allocation4], 1

</llo_original>
